<compile_context>
chip_gen: v6e
topology: v6e:2x2x1
jax: 0.10.0
libtpu: 0.0.40
codegen_flags: <defaults>
</compile_context>

<pallas_src>
import functools

import jax
import jax.numpy as jnp
from jax.experimental import pallas as pl
from jax.experimental.pallas import tpu as pltpu


_VMEM_LIMIT = 32 * 1024 * 1024


def _pick_hw_tile(rows, cp, max_bytes=2 << 20):
    """Largest divisor of `rows` whose (tile, cp) f32 block is <= max_bytes."""
    cap = max(1, max_bytes // (cp * 4))
    t = min(rows, cap)
    while rows % t:
        t -= 1
    return t


# ----------------------------------------------------------------------------
# Kernel 1: fused global avg(rgb) / max(depth) pooling, HW-tiled.
# Outputs accumulate in the resident (1, 1, Cp) output blocks.
# ----------------------------------------------------------------------------
def _pool_kernel(rgb_ref, dep_ref, avg_ref, max_ref, *, inv_rows):
    t = pl.program_id(1)

    @pl.when(t == 0)
    def _():
        avg_ref[...] = jnp.zeros_like(avg_ref)
        max_ref[...] = jnp.full_like(max_ref, -jnp.inf)

    rgb = rgb_ref[...].astype(jnp.float32)                 # (1, THW, Cp)
    dep = dep_ref[...].astype(jnp.float32)
    avg_ref[...] += jnp.sum(rgb, axis=1, keepdims=True)
    max_ref[...] = jnp.maximum(max_ref[...], jnp.max(dep, axis=1, keepdims=True))

    @pl.when(t == pl.num_programs(1) - 1)
    def _():
        avg_ref[...] *= inv_rows


# ----------------------------------------------------------------------------
# Kernel 2: the three squeeze/excite MLPs, batched over B.
# Emits scale = sigmoid(sum_convFC(...)) + 1  (residual folded in).
# ----------------------------------------------------------------------------
def _mlp_kernel(avg_ref, max_ref,
                w1_ref, b1_ref, w2_ref, b2_ref,            # avg_convFC (bias=True)
                w3_ref, w4_ref,                            # max_convFC (bias=False)
                w5_ref, w6_ref,                            # sum_convFC (bias=False)
                scale_ref):
    avg = avg_ref[...]                                     # (B, C) f32
    mx = max_ref[...]

    h1 = jnp.maximum(
        jnp.dot(avg, w1_ref[...], preferred_element_type=jnp.float32) + b1_ref[...], 0.0)
    rgb_fea = jax.nn.sigmoid(
        jnp.dot(h1, w2_ref[...], preferred_element_type=jnp.float32) + b2_ref[...])

    h2 = jnp.maximum(
        jnp.dot(mx, w3_ref[...], preferred_element_type=jnp.float32), 0.0)
    dep_fea = jax.nn.sigmoid(
        jnp.dot(h2, w4_ref[...], preferred_element_type=jnp.float32))

    s = rgb_fea + dep_fea
    h3 = jnp.maximum(
        jnp.dot(s, w5_ref[...], preferred_element_type=jnp.float32), 0.0)
    sum_fea = jax.nn.sigmoid(
        jnp.dot(h3, w6_ref[...], preferred_element_type=jnp.float32))   # (B, C)

    scale_ref[...] = sum_fea + 1.0                         # x*s + x == x*(s+1)


# ----------------------------------------------------------------------------
# Kernel 3: apply the channel scale to both streams (residual pre-folded).
# ----------------------------------------------------------------------------
def _apply_kernel(scale_ref, rgb_ref, dep_ref, rgb_out_ref, dep_out_ref):
    scale = scale_ref[...]                                 # (1, 1, Cp) f32
    rgb_out_ref[...] = (rgb_ref[...] * scale).astype(rgb_out_ref.dtype)
    dep_out_ref[...] = (dep_ref[...] * scale).astype(dep_out_ref.dtype)


# ----------------------------------------------------------------------------
# JointAttention forward, channels-last (B, H, W, C) in / out.
# ----------------------------------------------------------------------------
def joint_attention_nhwc(rgb_nhwc, dep_nhwc, p):
    B, H, W, C = rgb_nhwc.shape
    HW = H * W

    # Lane-pack C<128 stages: (B, HW, C) -> (B, HW/P, P*C) is a free reshape.
    P = 1
    if C < 128 and 128 % C == 0 and HW % (128 // C) == 0:
        P = 128 // C
    rows = HW // P
    Cp = C * P

    rgb = rgb_nhwc.reshape(B, rows, Cp)
    dep = dep_nhwc.reshape(B, rows, Cp)

    thw = _pick_hw_tile(rows, Cp)
    n_tiles = rows // thw

    act_spec = pl.BlockSpec((1, thw, Cp), lambda b, t: (b, t, 0))
    stat_spec = pl.BlockSpec((1, 1, Cp), lambda b, t: (b, 0, 0))

    # ---- phase 1: pooled stats (single streaming pass) ----------------------
    avg_p, max_p = pl.pallas_call(
        functools.partial(_pool_kernel, inv_rows=1.0 / rows),
        out_shape=(jax.ShapeDtypeStruct((B, 1, Cp), jnp.float32),
                   jax.ShapeDtypeStruct((B, 1, Cp), jnp.float32)),
        grid_spec=pltpu.PrefetchScalarGridSpec(
            num_scalar_prefetch=0,
            grid=(B, n_tiles),
            in_specs=[act_spec, act_spec],
            out_specs=[stat_spec, stat_spec],
        ),
        compiler_params=pltpu.CompilerParams(
            dimension_semantics=("parallel", "arbitrary"),
            vmem_limit_bytes=_VMEM_LIMIT),
    )(rgb, dep)

    # Fold packed lanes back to per-channel stats (tiny (B, Cp) ops).
    avg_c = avg_p.reshape(B, P, C).mean(axis=1)            # (B, C)
    max_c = max_p.reshape(B, P, C).max(axis=1)             # (B, C)

    # ---- phase 2: squeeze/excite MLPs batched over B ------------------------
    weights = (p["w1"], p["b1"], p["w2"], p["b2"],
               p["w3"], p["w4"], p["w5"], p["w6"])
    scale = pl.pallas_call(
        _mlp_kernel,
        out_shape=jax.ShapeDtypeStruct((B, C), jnp.float32),
        compiler_params=pltpu.CompilerParams(vmem_limit_bytes=_VMEM_LIMIT),
    )(avg_c, max_c, *weights)

    # Tile the (B, C) scale to the packed lane layout (lane l = p*C + c).
    scale_p = jnp.tile(scale, (1, P)).reshape(B, 1, Cp)

    # ---- phase 3: apply (residual already folded into scale) ----------------
    rgb_o, dep_o = pl.pallas_call(
        _apply_kernel,
        out_shape=(jax.ShapeDtypeStruct((B, rows, Cp), jnp.float32),
                   jax.ShapeDtypeStruct((B, rows, Cp), jnp.float32)),
        grid_spec=pltpu.PrefetchScalarGridSpec(
            num_scalar_prefetch=0,
            grid=(B, n_tiles),
            in_specs=[stat_spec, act_spec, act_spec],
            out_specs=[act_spec, act_spec],
        ),
        compiler_params=pltpu.CompilerParams(
            dimension_semantics=("parallel", "parallel"),
            vmem_limit_bytes=_VMEM_LIMIT),
    )(scale_p, rgb, dep)

    return rgb_o.reshape(B, H, W, C), dep_o.reshape(B, H, W, C)


def joint_attention(rgb_nchw, dep_nchw, p):
    """NCHW convenience wrapper (used only for the standalone sanity check)."""
    rgb = jnp.transpose(rgb_nchw, (0, 2, 3, 1))
    dep = jnp.transpose(dep_nchw, (0, 2, 3, 1))
    rgb_o, dep_o = joint_attention_nhwc(rgb, dep, p)
    return (jnp.transpose(rgb_o, (0, 3, 1, 2)),
            jnp.transpose(dep_o, (0, 3, 1, 2)))


# ----------------------------------------------------------------------------
# Pure-JAX reference of JointAttention (NCHW, for sanity checks only).
# ----------------------------------------------------------------------------
def joint_attention_ref(rgb, dep, p):
    avg = jnp.mean(rgb, axis=(2, 3))                       # (B, C)
    mx = jnp.max(dep, axis=(2, 3))                         # (B, C)
    h1 = jnp.maximum(avg @ p["w1"] + p["b1"], 0.0)
    rgb_fea = jax.nn.sigmoid(h1 @ p["w2"] + p["b2"])
    h2 = jnp.maximum(mx @ p["w3"], 0.0)
    dep_fea = jax.nn.sigmoid(h2 @ p["w4"])
    s = rgb_fea + dep_fea
    sum_fea = jax.nn.sigmoid(jnp.maximum(s @ p["w5"], 0.0) @ p["w6"])   # (B, C)
    scale = sum_fea[:, :, None, None]
    return rgb * scale + rgb, dep * scale + dep


# ----------------------------------------------------------------------------
# Parameter init (deterministic, synthetic).
# ----------------------------------------------------------------------------
def init_joint_attention_params(key, c, ratio=16):
    h = max(c // ratio, 1)
    ks = jax.random.split(key, 6)
    w = lambda k, shape: 0.05 * jax.random.normal(k, shape, jnp.float32)
    return dict(
        w1=w(ks[0], (c, h)), b1=jnp.zeros((1, h), jnp.float32),
        w2=w(ks[1], (h, c)), b2=jnp.zeros((1, c), jnp.float32),
        w3=w(ks[2], (c, h)),
        w4=w(ks[3], (h, c)),
        w5=w(ks[4], (c, h)),
        w6=w(ks[5], (h, c)),
    )


# ----------------------------------------------------------------------------
# Stand-in ResNet34 backbone stages (definitions not provided in the source).
# Channels-last (NHWC) end-to-end.
# ----------------------------------------------------------------------------
def stand_in_stage(x_nhwc, w):
    # TODO(synk): ResNet34_1..5 not given; deterministic 1x1-proj + stride-2 + ReLU.
    x = x_nhwc[:, ::2, ::2, :]
    return jnp.maximum(jnp.einsum("bhwc,cd->bhwd", x, w), 0.0)


# ----------------------------------------------------------------------------
# MSJCA forward (public API keeps NCHW at the edges, NHWC inside).
# ----------------------------------------------------------------------------
def init_msjca_params(key):
    chans = [(3, 64), (64, 64), (64, 128), (128, 256), (256, 512)]
    keys = jax.random.split(key, 16)
    params = {"rgb_stage": [], "dep_stage": [], "ja": []}
    ki = 0
    for (cin, cout) in chans:
        params["rgb_stage"].append(
            0.05 * jax.random.normal(keys[ki], (cin, cout), jnp.float32)); ki += 1
        params["dep_stage"].append(
            0.05 * jax.random.normal(keys[ki], (cin, cout), jnp.float32)); ki += 1
    for c in (64, 64, 128, 256, 512):
        params["ja"].append(init_joint_attention_params(keys[ki], c, ratio=16)); ki += 1
    return params


def msjca_forward(rgb_input, depth_input, params):
    # NCHW -> NHWC once, at the very edge.
    rgb = jnp.transpose(rgb_input, (0, 2, 3, 1))
    dep = jnp.transpose(depth_input, (0, 2, 3, 1))
    feats = []
    for i in range(5):
        rgb = stand_in_stage(rgb, params["rgb_stage"][i])
        dep = stand_in_stage(dep, params["dep_stage"][i])
        rgb, dep = joint_attention_nhwc(rgb, dep, params["ja"][i])
        feats.append((rgb, dep))
    to_nchw = lambda x: jnp.transpose(x, (0, 3, 1, 2))
    (rgb_3, depth_3) = feats[2]
    (rgb_4, depth_4) = feats[3]
    (rgb_5, depth_5) = feats[4]
    return (to_nchw(rgb_3), to_nchw(rgb_4), to_nchw(rgb_5),
            to_nchw(depth_3), to_nchw(depth_4), to_nchw(depth_5))


# ----------------------------------------------------------------------------
# Main
# ----------------------------------------------------------------------------
if __name__ == "__main__":
    key = jax.random.PRNGKey(0)
    k_in, k_p = jax.random.split(key)
    B, C_IN, H, W = 2, 3, 64, 64
    rgb_input = jax.random.normal(k_in, (B, C_IN, H, W), jnp.float32)
    depth_input = jax.random.normal(jax.random.fold_in(k_in, 1),
                                    (B, C_IN, H, W), jnp.float32)

    params = init_msjca_params(k_p)

    # Sanity check 1: C=64 (lane-packed path), HW=256.
    chk_rgb = jax.random.normal(jax.random.fold_in(k_in, 2), (B, 64, 16, 16), jnp.float32)
    chk_dep = jax.random.normal(jax.random.fold_in(k_in, 3), (B, 64, 16, 16), jnp.float32)
    r_pl, d_pl = joint_attention(chk_rgb, chk_dep, params["ja"][0])
    r_rf, d_rf = joint_attention_ref(chk_rgb, chk_dep, params["ja"][0])
    assert jnp.allclose(r_pl, r_rf, atol=1e-5, rtol=1e-5)
    assert jnp.allclose(d_pl, d_rf, atol=1e-5, rtol=1e-5)

    # Sanity check 2: stage-5 geometry (C=512, HW=4 < 8 sublanes) to validate
    # the masked sublane reductions in the pooling kernel.
    p512 = init_joint_attention_params(jax.random.fold_in(k_p, 7), 512, ratio=16)
    s_rgb = jax.random.normal(jax.random.fold_in(k_in, 4), (B, 512, 2, 2), jnp.float32)
    s_dep = jax.random.normal(jax.random.fold_in(k_in, 5), (B, 512, 2, 2), jnp.float32)
    r_pl, d_pl = joint_attention(s_rgb, s_dep, p512)
    r_rf, d_rf = joint_attention_ref(s_rgb, s_dep, p512)
    assert jnp.allclose(r_pl, r_rf, atol=1e-5, rtol=1e-5)
    assert jnp.allclose(d_pl, d_rf, atol=1e-5, rtol=1e-5)

    outs = jax.jit(msjca_forward)(rgb_input, depth_input, params)
    outs = jax.block_until_ready(outs)
    # Expected shapes: rgb_3 (2,128,8,8), rgb_4 (2,256,4,4), rgb_5 (2,512,2,2)
    assert outs[0].shape == (B, 128, 8, 8)
    assert outs[1].shape == (B, 256, 4, 4)
    assert outs[2].shape == (B, 512, 2, 2)
    print("KERNEL_OK")
</pallas_src>

<mosaic_0001>
module attributes {stable_mosaic.version = 11 : i64} {
  func.func @_pool_kernel(%arg0: i32, %arg1: i32, %arg2: memref<1x128x128xf32, #tpu.memory_space<vmem>>, %arg3: memref<1x128x128xf32, #tpu.memory_space<vmem>>, %arg4: memref<1x1x128xf32, #tpu.memory_space<vmem>>, %arg5: memref<1x1x128xf32, #tpu.memory_space<vmem>>) attributes {dimension_semantics = [#tpu.dimension_semantics<parallel>, #tpu.dimension_semantics<arbitrary>], iteration_bounds = array<i64: 2, 1>, scalar_prefetch = 0 : i64, scratch_operands = 0 : i64, tpu.core_type = #tpu.core_type<tc>, window_params = [{transform_indices = @transform_0, window_bounds = array<i64: 1, 128, 128>}, {transform_indices = @transform_1, window_bounds = array<i64: 1, 128, 128>}, {transform_indices = @transform_2, window_bounds = array<i64: 1, 1, 128>}, {transform_indices = @transform_3, window_bounds = array<i64: 1, 1, 128>}]} {
    %c0_i32 = arith.constant 0 : i32
    %0 = arith.cmpi eq, %arg1, %c0_i32 : i32
    %1 = arith.extui %0 : i1 to i32
    %c0_i32_0 = arith.constant 0 : i32
    %2 = arith.cmpi ne, %1, %c0_i32_0 : i32
    scf.if %2 {
      %cst_21 = arith.constant 0.000000e+00 : f32
      %18 = vector.broadcast %cst_21 : f32 to vector<1x1x128xf32>
      %c0_22 = arith.constant 0 : index
      %c0_23 = arith.constant 0 : index
      %c0_24 = arith.constant 0 : index
      %19 = vector.load %arg4[%c0_22, %c0_23, %c0_24] : memref<1x1x128xf32, #tpu.memory_space<vmem>>, vector<1x1x128xf32>
      tpu.vector_store %arg4[%c0_22, %c0_23, %c0_24], %18 {strides = array<i32>} : memref<1x1x128xf32, #tpu.memory_space<vmem>>, vector<1x1x128xf32>,
      %cst_25 = arith.constant 0xFF800000 : f32
      %20 = vector.broadcast %cst_25 : f32 to vector<1x1x128xf32>
      %c0_26 = arith.constant 0 : index
      %c0_27 = arith.constant 0 : index
      %c0_28 = arith.constant 0 : index
      %21 = vector.load %arg5[%c0_26, %c0_27, %c0_28] : memref<1x1x128xf32, #tpu.memory_space<vmem>>, vector<1x1x128xf32>
      tpu.vector_store %arg5[%c0_26, %c0_27, %c0_28], %20 {strides = array<i32>} : memref<1x1x128xf32, #tpu.memory_space<vmem>>, vector<1x1x128xf32>,
    } else {
    }
    %c0 = arith.constant 0 : index
    %c0_1 = arith.constant 0 : index
    %c0_2 = arith.constant 0 : index
    %3 = vector.load %arg2[%c0, %c0_1, %c0_2] : memref<1x128x128xf32, #tpu.memory_space<vmem>>, vector<1x128x128xf32>
    %c0_3 = arith.constant 0 : index
    %c0_4 = arith.constant 0 : index
    %c0_5 = arith.constant 0 : index
    %4 = vector.load %arg3[%c0_3, %c0_4, %c0_5] : memref<1x128x128xf32, #tpu.memory_space<vmem>>, vector<1x128x128xf32>
    %c0_6 = arith.constant 0 : index
    %c0_7 = arith.constant 0 : index
    %c0_8 = arith.constant 0 : index
    %5 = vector.load %arg4[%c0_6, %c0_7, %c0_8] : memref<1x1x128xf32, #tpu.memory_space<vmem>>, vector<1x1x128xf32>
    %cst = arith.constant dense<0.000000e+00> : vector<1x128xf32>
    %6 = vector.multi_reduction <add>, %3, %cst [1] : vector<1x128x128xf32> to vector<1x128xf32>
    %7 = vector.shape_cast %6 : vector<1x128xf32> to vector<1x1x128xf32>
    %8 = arith.addf %5, %7 : vector<1x1x128xf32>
    %c0_9 = arith.constant 0 : index
    %c0_10 = arith.constant 0 : index
    %c0_11 = arith.constant 0 : index
    %9 = vector.load %arg4[%c0_9, %c0_10, %c0_11] : memref<1x1x128xf32, #tpu.memory_space<vmem>>, vector<1x1x128xf32>
    tpu.vector_store %arg4[%c0_9, %c0_10, %c0_11], %8 {strides = array<i32>} : memref<1x1x128xf32, #tpu.memory_space<vmem>>, vector<1x1x128xf32>,
    %c0_12 = arith.constant 0 : index
    %c0_13 = arith.constant 0 : index
    %c0_14 = arith.constant 0 : index
    %10 = vector.load %arg5[%c0_12, %c0_13, %c0_14] : memref<1x1x128xf32, #tpu.memory_space<vmem>>, vector<1x1x128xf32>
    %cst_15 = arith.constant dense<0xFF800000> : vector<1x128xf32>
    %11 = vector.multi_reduction <maximumf>, %4, %cst_15 [1] : vector<1x128x128xf32> to vector<1x128xf32>
    %12 = vector.shape_cast %11 : vector<1x128xf32> to vector<1x1x128xf32>
    %13 = arith.maximumf %10, %12 : vector<1x1x128xf32>
    %c0_16 = arith.constant 0 : index
    %c0_17 = arith.constant 0 : index
    %c0_18 = arith.constant 0 : index
    %14 = vector.load %arg5[%c0_16, %c0_17, %c0_18] : memref<1x1x128xf32, #tpu.memory_space<vmem>>, vector<1x1x128xf32>
    tpu.vector_store %arg5[%c0_16, %c0_17, %c0_18], %13 {strides = array<i32>} : memref<1x1x128xf32, #tpu.memory_space<vmem>>, vector<1x1x128xf32>,
    %c0_i32_19 = arith.constant 0 : i32
    %15 = arith.cmpi eq, %arg1, %c0_i32_19 : i32
    %16 = arith.extui %15 : i1 to i32
    %c0_i32_20 = arith.constant 0 : i32
    %17 = arith.cmpi ne, %16, %c0_i32_20 : i32
    scf.if %17 {
      %c0_21 = arith.constant 0 : index
      %c0_22 = arith.constant 0 : index
      %c0_23 = arith.constant 0 : index
      %18 = vector.load %arg4[%c0_21, %c0_22, %c0_23] : memref<1x1x128xf32, #tpu.memory_space<vmem>>, vector<1x1x128xf32>
      %cst_24 = arith.constant 7.812500e-03 : f32
      %19 = vector.broadcast %cst_24 : f32 to vector<1x1x128xf32>
      %20 = arith.mulf %18, %19 : vector<1x1x128xf32>
      %c0_25 = arith.constant 0 : index
      %c0_26 = arith.constant 0 : index
      %c0_27 = arith.constant 0 : index
      %21 = vector.load %arg4[%c0_25, %c0_26, %c0_27] : memref<1x1x128xf32, #tpu.memory_space<vmem>>, vector<1x1x128xf32>
      tpu.vector_store %arg4[%c0_25, %c0_26, %c0_27], %20 {strides = array<i32>} : memref<1x1x128xf32, #tpu.memory_space<vmem>>, vector<1x1x128xf32>,
    } else {
    }
    return
  }
  func.func @transform_0(%arg0: i32, %arg1: i32) -> (i32, i32, i32) {
    %c0_i32 = arith.constant 0 : i32
    %c0_i32_0 = arith.constant 0 : i32
    return %arg0, %arg1, %c0_i32 : i32, i32, i32
  }
  func.func @transform_1(%arg0: i32, %arg1: i32) -> (i32, i32, i32) {
    %c0_i32 = arith.constant 0 : i32
    %c0_i32_0 = arith.constant 0 : i32
    return %arg0, %arg1, %c0_i32 : i32, i32, i32
  }
  func.func @transform_2(%arg0: i32, %arg1: i32) -> (i32, i32, i32) {
    %c0_i32 = arith.constant 0 : i32
    %c0_i32_0 = arith.constant 0 : i32
    %c0_i32_1 = arith.constant 0 : i32
    return %arg0, %c0_i32, %c0_i32_0 : i32, i32, i32
  }
  func.func @transform_3(%arg0: i32, %arg1: i32) -> (i32, i32, i32) {
    %c0_i32 = arith.constant 0 : i32
    %c0_i32_0 = arith.constant 0 : i32
    %c0_i32_1 = arith.constant 0 : i32
    return %arg0, %c0_i32, %c0_i32_0 : i32, i32, i32
  }
}

</mosaic_0001>

<llo_original>
// kernel: tpu_custom_call.1
$region0: #{tpu_custom_call.1}
  #allocation0 [shape = 'u32[]', space=smem, size = 0x4, offset = 0x4, fixed_abs, tag = 'smem constant byte address 0x4 - core index']
  #allocation1 [shape = 'u32[144,128]{1,0:T(1,128)}', space=vmem, size = 0x12000, scoped, tag = 'internal scratch']
  %s0 = inlined_call_operand.hbm [shape: f32[2,128,128], index: 0, kind: input, shape index: {}]
  %s1 = inlined_call_operand.hbm [shape: f32[2,128,128], index: 1, kind: input, shape index: {}]
  %s2 = inlined_call_operand.hbm [shape: f32[2,1,128], index: 2, kind: output, shape index: {0}]
  %s3 = inlined_call_operand.hbm [shape: f32[2,1,128], index: 3, kind: output, shape index: {1}]
  %4 = xla_tuple %s2, %s3
  %s5 = sld [smem:[#allocation0]]
  $region65: #{tpu_custom_call.1} parent=0
    _
  %s7 = ssub.s32 1, %s5
  %s8 = scalar_select 0, %s7, %s5
  $region1: #{tpu_custom_call.1} parent=0
    #allocation2 [shape = 'u8[131072]{0}', space=vmem, size = 0x20000, scoped, tag = 'input window, operand 0']
    #allocation3 [shape = 's32[2]{0}', space=sflag, size = 0x8, scoped, tag = 'scoped memory for tpu_custom_call.1']
    #allocation4 [shape = 's32[2]{0}', space=sflag, size = 0x8, scoped, tag = 'scoped memory for tpu_custom_call.1']
    #allocation5 [shape = 'u8[131072]{0}', space=vmem, size = 0x20000, scoped, tag = 'input window, operand 1']
    #allocation6 [shape = 's32[2]{0}', space=sflag, size = 0x8, scoped, tag = 'scoped memory for tpu_custom_call.1']
    #allocation7 [shape = 'u8[1024]{0}', space=vmem, size = 0x400, scoped, tag = 'output window, operand 0']
    #allocation8 [shape = 'u8[1024]{0}', space=vmem, size = 0x400, scoped, tag = 'output window, operand 1']
    #allocation9 [shape = 's32[2]{0}', space=sflag, size = 0x8, scoped, tag = 'scoped memory for tpu_custom_call.1']
    %9 = vsyncpa [#allocation3], 0
    %s10 = scalar_lea.sflag [#allocation3], 1
    %11 = vsyncpa %s10, 0
    %12 = vsyncpa [#allocation6], 0
    %s13 = scalar_lea.sflag [#allocation6], 1
    %14 = vsyncpa %s13, 0
    %15 = vsyncpa [#allocation4], 0
    %s16 = scalar_lea.sflag [#allocation4], 1
    %17 = vsyncpa %s16, 0
    %18 = vsyncpa [#allocation9], 0
    %s19 = scalar_lea.sflag [#allocation9], 1
    %20 = vsyncpa %s19, 0
    loop: start=0, step=1, limit=4
    $region2: #{tpu_custom_call.1} parent=1 // loop_pre_header
      _
    $region3: #{tpu_custom_call.1} parent=1 // loop_header
      %s22 = sphi 0, %s26
      %p23 = scmp.ge.s32.totalorder %s22, 4
      %s29 = sphi 0, %s41
      %s30 = sphi 0, %s37
      %s31 = sphi 0, %s29
      %s32 = sphi 0, %s30
      %s33 = sphi 0, %s31
      %s34 = sphi 0, %s32
      %s46 = sphi 0, %s48
      %s49 = sphi 0, %s46
      %s50 = sphi 0, %s49
      %s66 = sphi 0, %s50
      %s74 = sphi 0, %s76
      %s77 = sphi 0, %s74
      %s78 = sphi 0, %s77
      %s94 = sphi 0, %s78
      %s100 = sphi 0, %s102
      %s103 = sphi 0, %s100
      %s104 = sphi 0, %s103
      %s120 = sphi 0, %s104
      %s126 = sphi 0, %s128
      %s129 = sphi 0, %s126
      %s130 = sphi 0, %s129
      %s146 = sphi 0, %s130
    $region4: #{tpu_custom_call.1} parent=1 // loop_header_branch
      %25 = sbr.rel (%p23) target = $region8
    $region5: #{tpu_custom_call.1} parent=1 // loop_body
      %s27 = ssub.s32 %s22, 1
      %s28 = ssub.s32 %s22, 2
      %s35 = sadd.s32 1, %s30
      %p36 = scmp.ge.s32.totalorder %s35, 1
      %s37 = scalar_select %p36, 0, %s35
      %s38 = sadd.s32 1, %s29
      %s39 = scalar_select %p36, %s38, %s29
      %p40 = scmp.ge.s32.totalorder %s39, 2
      %s41 = scalar_select %p40, 0, %s39
      %s42 = ssub.s32 %s29, %s41
      %s43 = ssub.s32 %s30, %s37
      %s44 = sor.u32 %s42, %s43
      %p45 = scmp.eq.s32.totalorder %s44, 0
      %s47 = sadd.s32 %s46, 1
      %s48 = scalar_select %p45, %s46, %s47
      %p51 = pneg %p45
      %p52 = scmp.eq.s32.totalorder %s22, 1
      %p53 = por %p51, %p52
      %p54 = scmp.ne.s32.totalorder %s46, %s49
      %p55 = scmp.eq.s32.totalorder %s22, 0
      %p56 = por %p54, %p55
      %p57 = scmp.ne.s32.totalorder %s46, %s49
      %p58 = scmp.eq.s32.totalorder %s27, 1
      %p59 = por %p57, %p58
      %p60 = scmp.ne.s32.totalorder %s49, %s50
      %p61 = scmp.eq.s32.totalorder %s27, 0
      %p62 = por %p60, %p61
      %p63 = scmp.ne.s32.totalorder %s49, %s50
      %p64 = scmp.eq.s32.totalorder %s28, 1
      %p65 = por %p63, %p64
      %p67 = scmp.ne.s32.totalorder %s50, %s66
      %p68 = scmp.eq.s32.totalorder %s28, 0
      %p69 = por %p67, %p68
      %s70 = ssub.s32 %s29, %s41
      %s71 = ssub.s32 %s30, %s37
      %s72 = sor.u32 %s70, %s71
      %p73 = scmp.eq.s32.totalorder %s72, 0
      %s75 = sadd.s32 %s74, 1
      %s76 = scalar_select %p73, %s74, %s75
      %p79 = pneg %p73
      %p80 = scmp.eq.s32.totalorder %s22, 1
      %p81 = por %p79, %p80
      %p82 = scmp.ne.s32.totalorder %s74, %s77
      %p83 = scmp.eq.s32.totalorder %s22, 0
      %p84 = por %p82, %p83
      %p85 = scmp.ne.s32.totalorder %s74, %s77
      %p86 = scmp.eq.s32.totalorder %s27, 1
      %p87 = por %p85, %p86
      %p88 = scmp.ne.s32.totalorder %s77, %s78
      %p89 = scmp.eq.s32.totalorder %s27, 0
      %p90 = por %p88, %p89
      %p91 = scmp.ne.s32.totalorder %s77, %s78
      %p92 = scmp.eq.s32.totalorder %s28, 1
      %p93 = por %p91, %p92
      %p95 = scmp.ne.s32.totalorder %s78, %s94
      %p96 = scmp.eq.s32.totalorder %s28, 0
      %p97 = por %p95, %p96
      %s98 = ssub.s32 %s29, %s41
      %p99 = scmp.eq.s32.totalorder %s98, 0
      %s101 = sadd.s32 %s100, 1
      %s102 = scalar_select %p99, %s100, %s101
      %p105 = pneg %p99
      %p106 = scmp.eq.s32.totalorder %s22, 1
      %p107 = por %p105, %p106
      %p108 = scmp.ne.s32.totalorder %s100, %s103
      %p109 = scmp.eq.s32.totalorder %s22, 0
      %p110 = por %p108, %p109
      %p111 = scmp.ne.s32.totalorder %s100, %s103
      %p112 = scmp.eq.s32.totalorder %s27, 1
      %p113 = por %p111, %p112
      %p114 = scmp.ne.s32.totalorder %s103, %s104
      %p115 = scmp.eq.s32.totalorder %s27, 0
      %p116 = por %p114, %p115
      %p117 = scmp.ne.s32.totalorder %s103, %s104
      %p118 = scmp.eq.s32.totalorder %s28, 1
      %p119 = por %p117, %p118
      %p121 = scmp.ne.s32.totalorder %s104, %s120
      %p122 = scmp.eq.s32.totalorder %s28, 0
      %p123 = por %p121, %p122
      %s124 = ssub.s32 %s29, %s41
      %p125 = scmp.eq.s32.totalorder %s124, 0
      %s127 = sadd.s32 %s126, 1
      %s128 = scalar_select %p125, %s126, %s127
      %p131 = pneg %p125
      %p132 = scmp.eq.s32.totalorder %s22, 1
      %p133 = por %p131, %p132
      %p134 = scmp.ne.s32.totalorder %s126, %s129
      %p135 = scmp.eq.s32.totalorder %s22, 0
      %p136 = por %p134, %p135
      %p137 = scmp.ne.s32.totalorder %s126, %s129
      %p138 = scmp.eq.s32.totalorder %s27, 1
      %p139 = por %p137, %p138
      %p140 = scmp.ne.s32.totalorder %s129, %s130
      %p141 = scmp.eq.s32.totalorder %s27, 0
      %p142 = por %p140, %p141
      %p143 = scmp.ne.s32.totalorder %s129, %s130
      %p144 = scmp.eq.s32.totalorder %s28, 1
      %p145 = por %p143, %p144
      %p147 = scmp.ne.s32.totalorder %s130, %s146
      %p148 = scmp.eq.s32.totalorder %s28, 0
      %p149 = por %p147, %p148
      %p150 = scmp.le.s32.totalorder 1, %s22
      %p151 = scmp.lt.s32.totalorder %s22, 3
      %p152 = pnand %p150, %p151
      %p153 = pneg %p152
      // Predicated region
      $region9: #{tpu_custom_call.1} parent=5 // pred_check
        _
      $region10: #{tpu_custom_call.1} parent=5 // pred_check_branch
        %155 = sbr.rel (%p152) target = $region12
      $region11: #{tpu_custom_call.1} parent=5 // pred_region
        %s156 = ssub.s32 %s22, 1
      $region12: #{tpu_custom_call.1} parent=5 // pred_fallthru
        _
      %p157 = scmp.lt.s32.totalorder %s22, 2
      // Predicated region
      $region13: #{tpu_custom_call.1} parent=5 // pred_check
        %p158 = pneg %p157
      $region14: #{tpu_custom_call.1} parent=5 // pred_check_branch
        %160 = sbr.rel (%p158) target = $region16
      $region15: #{tpu_custom_call.1} parent=5 // pred_region
        // Predicated region
        $region17: #{tpu_custom_call.1} parent=15 // pred_check
          %p161 = pneg %p56
        $region18: #{tpu_custom_call.1} parent=15 // pred_check_branch
          %163 = sbr.rel (%p161) target = $region20
        $region19: #{tpu_custom_call.1} parent=15 // pred_region
          %s164 = sand.u32 %s46, 1
          %s165 = scalar_lea.sflag [#allocation3], %s164
          %s166 = sand.u32 %s46, 1
          %s167 = smul.addr %s166, 128
          %s168 = scalar_lea.vmem [#allocation2], %s167
          %s169 = smul.u32 16, %s30
          %s171 = ssub.s32 2048, 2048
          %172 = vsyncadd %s165, %s171
          %s173 = smul.addr %s29, 16
          %s174 = sadd.s32 %s169, %s173
          %s175 = smul.addr %s174, 128
          %s176 = scalar_lea.hbm %s0, %s175
          %s177 = sshll.u32 %s168, 4
          %s178 = int_to_ptr.vmem [resolvable:$true] %s177
          %183 = dma.hbm_to_vmem [thread:$0]  %s176, 2048, %s178, %s165, 128, 128, 8
        $region20: #{tpu_custom_call.1} parent=15 // pred_fallthru
          _
        // Predicated region
        $region21: #{tpu_custom_call.1} parent=15 // pred_check
          %p184 = pneg %p84
        $region22: #{tpu_custom_call.1} parent=15 // pred_check_branch
          %186 = sbr.rel (%p184) target = $region24
        $region23: #{tpu_custom_call.1} parent=15 // pred_region
          %s187 = sand.u32 %s74, 1
          %s188 = scalar_lea.sflag [#allocation6], %s187
          %s189 = sand.u32 %s74, 1
          %s190 = smul.addr %s189, 128
          %s191 = scalar_lea.vmem [#allocation5], %s190
          %s192 = smul.u32 16, %s30
          %s194 = ssub.s32 2048, 2048
          %195 = vsyncadd %s188, %s194
          %s196 = smul.addr %s29, 16
          %s197 = sadd.s32 %s192, %s196
          %s198 = smul.addr %s197, 128
          %s199 = scalar_lea.hbm %s1, %s198
          %s200 = sshll.u32 %s191, 4
          %s201 = int_to_ptr.vmem [resolvable:$true] %s200
          %206 = dma.hbm_to_vmem [thread:$0]  %s199, 2048, %s201, %s188, 128, 128, 8
        $region24: #{tpu_custom_call.1} parent=15 // pred_fallthru
          _
      $region16: #{tpu_custom_call.1} parent=5 // pred_fallthru
        _
      %p207 = scmp.le.s32.totalorder 1, %s22
      %p208 = scmp.lt.s32.totalorder %s22, 3
      %p209 = pnand %p207, %p208
      %p210 = pneg %p209
      // Predicated region
      $region25: #{tpu_custom_call.1} parent=5 // pred_check
        _
      $region26: #{tpu_custom_call.1} parent=5 // pred_check_branch
        %212 = sbr.rel (%p209) target = $region28
      $region27: #{tpu_custom_call.1} parent=5 // pred_region
        %s213 = ssub.s32 %s22, 1
        %s214 = sand.u32 %s49, 1
        %s215 = scalar_lea.sflag [#allocation3], %s214
        %s216 = sand.u32 %s49, 1
        %s217 = smul.addr %s216, 128
        %s218 = scalar_lea.vmem [#allocation2], %s217
        // Predicated region
        $region29: #{tpu_custom_call.1} parent=27 // pred_check
          %p219 = pneg %p62
        $region30: #{tpu_custom_call.1} parent=27 // pred_check_branch
          %221 = sbr.rel (%p219) target = $region32
        $region31: #{tpu_custom_call.1} parent=27 // pred_region
          %222 = dma.done %s215, 2048
        $region32: #{tpu_custom_call.1} parent=27 // pred_fallthru
          _
        %s223 = sand.u32 %s77, 1
        %s224 = scalar_lea.sflag [#allocation6], %s223
        %s225 = sand.u32 %s77, 1
        %s226 = smul.addr %s225, 128
        %s227 = scalar_lea.vmem [#allocation5], %s226
        // Predicated region
        $region33: #{tpu_custom_call.1} parent=27 // pred_check
          %p228 = pneg %p90
        $region34: #{tpu_custom_call.1} parent=27 // pred_check_branch
          %230 = sbr.rel (%p228) target = $region36
        $region35: #{tpu_custom_call.1} parent=27 // pred_region
          %231 = dma.done %s224, 2048
        $region36: #{tpu_custom_call.1} parent=27 // pred_fallthru
          _
        %s232 = sand.u32 %s49, 1
        %s233 = scalar_lea.sflag [#allocation3], %s232
        %s234 = sand.u32 %s49, 1
        %s235 = smul.addr %s234, 128
        %s236 = scalar_lea.vmem [#allocation2], %s235
        %p237 = pneg %p62
        %p238 = pneg %p59
        %s239 = sand.u32 %s77, 1
        %s240 = scalar_lea.sflag [#allocation6], %s239
        %s241 = sand.u32 %s77, 1
        %s242 = smul.addr %s241, 128
        %s243 = scalar_lea.vmem [#allocation5], %s242
        %p244 = pneg %p90
        %p245 = pneg %p87
        %p246 = pneg %p116
        %p247 = pneg %p113
        %s248 = sand.u32 %s103, 1
        %s249 = scalar_lea.sflag [#allocation4], %s248
        %s250 = sand.u32 %s103, 1
        %s251 = scalar_lea.vmem [#allocation7], %s250
        %p252 = pneg %p142
        %p253 = pneg %p139
        %s254 = sand.u32 %s129, 1
        %s255 = scalar_lea.sflag [#allocation9], %s254
        %s256 = sand.u32 %s129, 1
        %s257 = scalar_lea.vmem [#allocation8], %s256
        %s258 = smul.u32 16, %s32
        %s259 = smul.u32 16, %s32
        %p260 = scmp.eq.s32.totalorder %s32, 0
        // Predicated region
        $region37: #{tpu_custom_call.1} parent=27 // pred_check
          %p261 = pneg %p260
        $region38: #{tpu_custom_call.1} parent=27 // pred_check_branch
          %263 = sbr.rel (%p261) target = $region40
        $region39: #{tpu_custom_call.1} parent=27 // pred_region
          %264 = vst [vmem:[%s251] sm:$0x1] 0.0
          %265 = vst [vmem:[%s257] sm:$0x1] -inf
        $region40: #{tpu_custom_call.1} parent=27 // pred_fallthru
          _
        %v266 = vld [vmem:[%s218] sm:$0xff]
        %v267 = vld [vmem:[%s218 + $0x8] sm:$0xff]
        %v268 = vld [vmem:[%s218 + $0x10] sm:$0xff]
        %v269 = vld [vmem:[%s218 + $0x18] sm:$0xff]
        %v270 = vld [vmem:[%s218 + $0x20] sm:$0xff]
        %v271 = vld [vmem:[%s218 + $0x28] sm:$0xff]
        %v272 = vld [vmem:[%s218 + $0x30] sm:$0xff]
        %v273 = vld [vmem:[%s218 + $0x38] sm:$0xff]
        %v274 = vld [vmem:[%s218 + $0x40] sm:$0xff]
        %v275 = vld [vmem:[%s218 + $0x48] sm:$0xff]
        %v276 = vld [vmem:[%s218 + $0x50] sm:$0xff]
        %v277 = vld [vmem:[%s218 + $0x58] sm:$0xff]
        %v278 = vld [vmem:[%s218 + $0x60] sm:$0xff]
        %v279 = vld [vmem:[%s218 + $0x68] sm:$0xff]
        %v280 = vld [vmem:[%s218 + $0x70] sm:$0xff]
        %v281 = vld [vmem:[%s218 + $0x78] sm:$0xff]
        %v282 = vld [vmem:[%s227] sm:$0xff]
        %v283 = vld [vmem:[%s227 + $0x8] sm:$0xff]
        %v284 = vld [vmem:[%s227 + $0x10] sm:$0xff]
        %v285 = vld [vmem:[%s227 + $0x18] sm:$0xff]
        %v286 = vld [vmem:[%s227 + $0x20] sm:$0xff]
        %v287 = vld [vmem:[%s227 + $0x28] sm:$0xff]
        %v288 = vld [vmem:[%s227 + $0x30] sm:$0xff]
        %v289 = vld [vmem:[%s227 + $0x38] sm:$0xff]
        %v290 = vld [vmem:[%s227 + $0x40] sm:$0xff]
        %v291 = vld [vmem:[%s227 + $0x48] sm:$0xff]
        %v292 = vld [vmem:[%s227 + $0x50] sm:$0xff]
        %v293 = vld [vmem:[%s227 + $0x58] sm:$0xff]
        %v294 = vld [vmem:[%s227 + $0x60] sm:$0xff]
        %v295 = vld [vmem:[%s227 + $0x68] sm:$0xff]
        %v296 = vld [vmem:[%s227 + $0x70] sm:$0xff]
        %v297 = vld [vmem:[%s227 + $0x78] sm:$0xff]
        %v298 = vld [vmem:[%s251] sm:$0x1]
        %v299 = vadd.f32 %v266, %v267
        %v300 = vadd.f32 %v299, %v268
        %v301 = vadd.f32 %v300, %v269
        %v302 = vadd.f32 %v301, %v270
        %v303 = vadd.f32 %v302, %v271
        %v304 = vadd.f32 %v303, %v272
        %v305 = vadd.f32 %v304, %v273
        %v306 = vadd.f32 %v305, %v274
        %v307 = vadd.f32 %v306, %v275
        %v308 = vadd.f32 %v307, %v276
        %v309 = vadd.f32 %v308, %v277
        %v310 = vadd.f32 %v309, %v278
        %v311 = vadd.f32 %v310, %v279
        %v312 = vadd.f32 %v311, %v280
        %v313 = vadd.f32 %v312, %v281
        %v314 = vrot.slane %v313, 4
        %v315 = vadd.f32 %v313, %v314
        %v316 = vrot.slane %v315, 2
        %v317 = vadd.f32 %v315, %v316
        %v318 = vrot.slane %v317, 1
        %v319 = vadd.f32 %v317, %v318
        %v320 = vadd.f32 %v298, %v319
        %321 = vst [vmem:[%s251] sm:$0x1] %v320
        %v322 = vld [vmem:[%s257] sm:$0x1]
        %v323 = vmax.f32 %v282, %v286
        %v324 = vmax.f32 %v283, %v287
        %v325 = vmax.f32 %v284, %v288
        %v326 = vmax.f32 %v285, %v289
        %v327 = vmax.f32 %v323, %v290
        %v328 = vmax.f32 %v324, %v291
        %v329 = vmax.f32 %v325, %v292
        %v330 = vmax.f32 %v326, %v293
        %v331 = vmax.f32 %v327, %v294
        %v332 = vmax.f32 %v328, %v295
        %v333 = vmax.f32 %v329, %v296
        %v334 = vmax.f32 %v330, %v297
        %v335 = vmax.f32 %v331, %v332
        %v336 = vmax.f32 %v333, %v334
        %v337 = vmax.f32 %v335, %v336
        %v338 = vrot.slane %v337, 4
        %v339 = vmax.f32 %v337, %v338
        %v340 = vrot.slane %v339, 2
        %v341 = vmax.f32 %v339, %v340
        %v342 = vrot.slane %v341, 1
        %v343 = vmax.f32 %v341, %v342
        %v344 = vmax.f32 %v322, %v343
        %345 = vst [vmem:[%s257] sm:$0x1] %v344
        // Predicated region
        $region41: #{tpu_custom_call.1} parent=27 // pred_check
          %p346 = pneg %p260
        $region42: #{tpu_custom_call.1} parent=27 // pred_check_branch
          %348 = sbr.rel (%p346) target = $region44
        $region43: #{tpu_custom_call.1} parent=27 // pred_region
          %v349 = vld [vmem:[%s251] sm:$0x1]
          %v350 = vmul.f32 %v349, 0.0078125
          %351 = vst [vmem:[%s251] sm:$0x1] %v350
        $region44: #{tpu_custom_call.1} parent=27 // pred_fallthru
          _
        %s352 = sand.u32 %s103, 1
        %s353 = scalar_lea.sflag [#allocation4], %s352
        %s354 = sand.u32 %s103, 1
        %s355 = scalar_lea.vmem [#allocation7], %s354
        %s356 = sand.u32 %s129, 1
        %s357 = scalar_lea.sflag [#allocation9], %s356
        %s358 = sand.u32 %s129, 1
        %s359 = scalar_lea.vmem [#allocation8], %s358
        // Predicated region
        $region45: #{tpu_custom_call.1} parent=27 // pred_check
          %p360 = pneg %p113
        $region46: #{tpu_custom_call.1} parent=27 // pred_check_branch
          %362 = sbr.rel (%p360) target = $region48
        $region47: #{tpu_custom_call.1} parent=27 // pred_region
          %s364 = ssub.s32 16, 16
          %365 = vsyncadd %s353, %s364
          %s366 = smul.addr %s31, 16
          %s367 = scalar_lea.hbm %s2, %s366
          %s369 = sshll.u32 %s355, 4
          %s370 = int_to_ptr.vmem [resolvable:$true] %s369
          %372 = dma.vmem_to_hbm [thread:$0]  %s370, 16, %s367, %s353
        $region48: #{tpu_custom_call.1} parent=27 // pred_fallthru
          _
        // Predicated region
        $region49: #{tpu_custom_call.1} parent=27 // pred_check
          %p373 = pneg %p139
        $region50: #{tpu_custom_call.1} parent=27 // pred_check_branch
          %375 = sbr.rel (%p373) target = $region52
        $region51: #{tpu_custom_call.1} parent=27 // pred_region
          %s377 = ssub.s32 16, 16
          %378 = vsyncadd %s357, %s377
          %s379 = smul.addr %s31, 16
          %s380 = scalar_lea.hbm %s3, %s379
          %s382 = sshll.u32 %s359, 4
          %s383 = int_to_ptr.vmem [resolvable:$true] %s382
          %385 = dma.vmem_to_hbm [thread:$0]  %s383, 16, %s380, %s357
        $region52: #{tpu_custom_call.1} parent=27 // pred_fallthru
          _
      $region28: #{tpu_custom_call.1} parent=5 // pred_fallthru
        _
      %p386 = scmp.le.s32.totalorder 2, %s22
      // Predicated region
      $region53: #{tpu_custom_call.1} parent=5 // pred_check
        %p387 = pneg %p386
      $region54: #{tpu_custom_call.1} parent=5 // pred_check_branch
        %389 = sbr.rel (%p387) target = $region56
      $region55: #{tpu_custom_call.1} parent=5 // pred_region
        %s390 = ssub.s32 %s22, 2
        // Predicated region
        $region57: #{tpu_custom_call.1} parent=55 // pred_check
          %p391 = pneg %p119
        $region58: #{tpu_custom_call.1} parent=55 // pred_check_branch
          %393 = sbr.rel (%p391) target = $region60
        $region59: #{tpu_custom_call.1} parent=55 // pred_region
          %s394 = sand.u32 %s104, 1
          %s395 = scalar_lea.sflag [#allocation4], %s394
          %s396 = sand.u32 %s104, 1
          %s397 = scalar_lea.vmem [#allocation7], %s396
          %398 = dma.done %s395, 16
        $region60: #{tpu_custom_call.1} parent=55 // pred_fallthru
          _
        // Predicated region
        $region61: #{tpu_custom_call.1} parent=55 // pred_check
          %p399 = pneg %p145
        $region62: #{tpu_custom_call.1} parent=55 // pred_check_branch
          %401 = sbr.rel (%p399) target = $region64
        $region63: #{tpu_custom_call.1} parent=55 // pred_region
          %s402 = sand.u32 %s130, 1
          %s403 = scalar_lea.sflag [#allocation9], %s402
          %s404 = sand.u32 %s130, 1
          %s405 = scalar_lea.vmem [#allocation8], %s404
          %406 = dma.done %s403, 16
        $region64: #{tpu_custom_call.1} parent=55 // pred_fallthru
          _
      $region56: #{tpu_custom_call.1} parent=5 // pred_fallthru
        _
    $region6: #{tpu_custom_call.1} parent=1 // loop_footer
      %s26 = sadd.s32 1, %s22
    $region7: #{tpu_custom_call.1} parent=1 // loop_footer_branch
      %21 = sbr.rel target = $region3
    $region8: #{tpu_custom_call.1} parent=1 // loop_exit
      _
    %407 = vsyncpa [#allocation3], 1
    %s408 = scalar_lea.sflag [#allocation3], 1
    %409 = vsyncpa %s408, 1
    %410 = vsyncpa [#allocation6], 1
    %s411 = scalar_lea.sflag [#allocation6], 1
    %412 = vsyncpa %s411, 1
    %413 = vsyncpa [#allocation4], 1
    %s414 = scalar_lea.sflag [#allocation4], 1
    %415 = vsyncpa %s414, 1
    %416 = vsyncpa [#allocation9], 1
    %s417 = scalar_lea.sflag [#allocation9], 1
    %418 = vsyncpa %s417, 1

</llo_original>
